<compile_context>
chip_gen: v7x
topology: tpu7x:2x2x1
jax: 0.10.0
libtpu: 0.0.40
codegen_flags: <defaults>
</compile_context>

<pallas_src>
import jax
import jax.numpy as jnp
import numpy as np
from jax.experimental import pallas as pl
from jax.experimental.pallas import tpu as pltpu


def _make_se_kernel(inv_hw):
    # Python scalar -> baked into the kernel body as an immediate.
    # (A jnp.float32 here would be a captured constant -> trace error.)
    inv_hw = float(inv_hw)

    def _se_kernel(x_ref, w1_ref, b1_ref, w2_ref, b2_ref, o_ref):
        x = x_ref[...]                                              # (Bt, C, HW)
        # AdaptiveAvgPool2d(1): mean over the spatial (lane) axis, f32 accum.
        pooled = jnp.sum(x, axis=-1, dtype=jnp.float32) * inv_hw    # (Bt, C)
        # fc: Linear(C, Cr) -> ReLU -> Linear(Cr, C) -> ReLU, batched over tile.
        h = jnp.dot(pooled, w1_ref[...], preferred_element_type=jnp.float32)
        h = jnp.maximum(h + b1_ref[...], 0.0)                       # (Bt, Cr)
        y = jnp.dot(h, w2_ref[...], preferred_element_type=jnp.float32)
        y = jnp.maximum(y + b2_ref[...], 0.0)                       # (Bt, C)
        # Scale in f32 (gate stays full precision), broadcast along lanes.
        o_ref[...] = (x.astype(jnp.float32) * y[:, :, None]).astype(o_ref.dtype)

    return _se_kernel


def _tpu_config():
    """(vmem_capacity_bytes, num_tensorcores, target_block_bytes).
    Conservative (v7x-like) defaults when the device can't be identified."""
    vmem, cores, target = 64 << 20, 1, 8 << 20
    try:
        kind = jax.devices()[0].device_kind.lower()
    except Exception:
        kind = ""
    if "v7" in kind:
        vmem, cores, target = 64 << 20, 2, 8 << 20
    elif any(t in kind for t in ("v6", "v5e", "v5 lite", "v5litepod")):
        vmem, cores, target = 128 << 20, 1, 12 << 20
    try:  # prefer the real VMEM size when the query is available
        vmem = int(getattr(pltpu.get_tpu_info(), "vmem_capacity_bytes", vmem))
    except Exception:
        pass
    return vmem, cores, target


def _choose_b_tile(B, per_batch_bytes, target_bytes, num_cores):
    """Largest divisor of B whose block fits target_bytes.  On multi-TensorCore
    chips force at least `num_cores` grid steps, preferring a step count that
    is a multiple of num_cores so the cores stay load-balanced."""
    best = 1
    for d in range(1, B + 1):
        if B % d == 0 and d * per_batch_bytes <= target_bytes:
            best = d
    if num_cores > 1 and B > 1 and (B // best) < num_cores:
        balanced, fallback = None, None
        for d in range(B // num_cores, 0, -1):
            if B % d == 0:
                if fallback is None:
                    fallback = d
                if (B // d) % num_cores == 0:
                    balanced = d
                    break
        if balanced is not None:
            best = balanced
        elif fallback is not None:
            best = fallback
    return best


def speaker_encoder_layer(x_nchw, w1, b1, w2, b2):
    """x_nchw: (B, C, H, W).  Weights follow PyTorch Linear convention:
       w1: (C//r, C), b1: (C//r,), w2: (C, C//r), b2: (C,)."""
    B, C, H, W = x_nchw.shape
    Cr = w1.shape[0]
    HW = H * W
    # TODO(synk): when HW % 128 != 0 (e.g. 7*7=49) add a lane-packing variant;
    # the direct path below is correct but output stores are lane-sparse.

    x = x_nchw.reshape(B, C, HW)          # free: contiguous reshape, NO transpose
    w1_t = w1.T.astype(jnp.float32)        # (C, Cr)
    w2_t = w2.T.astype(jnp.float32)        # (Cr, C)
    b1_2d = b1.reshape(1, Cr).astype(jnp.float32)
    b2_2d = b2.reshape(1, C).astype(jnp.float32)

    itemsize = jnp.dtype(x_nchw.dtype).itemsize
    per_batch = C * HW * itemsize
    weight_bytes = (C * Cr + Cr * C + C + Cr) * 4

    vmem_cap, num_cores, target_bytes = _tpu_config()
    b_tile = _choose_b_tile(B, per_batch, target_bytes, num_cores)
    nb = B // b_tile
    block_bytes = b_tile * per_batch

    # Budget: leave headroom below physical VMEM; allow big blocks on 128 MiB parts.
    vmem_budget = max(min(vmem_cap - (16 << 20), 100 << 20), 16 << 20)
    needed_db = 4 * block_bytes + 2 * weight_bytes + (2 << 20)  # x + out, 2x buffered
    if needed_db <= vmem_budget:
        stream_kwargs = {}                 # keep the default Buffered(2) pipelining
        vmem_limit = int(min(max(needed_db, 16 << 20), vmem_budget))
    else:
        # Per-batch (C, HW) block too large to double-buffer on this chip:
        # drop to single buffering (loses DMA/compute overlap but still runs).
        # TODO(synk): replace with an HW-chunk grid axis (pool pass + scale pass).
        stream_kwargs = {"pipeline_mode": pl.Buffered(1)}
        vmem_limit = int(min(max(2 * block_bytes + 2 * weight_bytes + (2 << 20),
                                 16 << 20), vmem_budget))

    cost = pl.CostEstimate(
        flops=3 * B * C * HW + 4 * B * C * Cr,
        transcendentals=0,
        bytes_accessed=2 * B * C * HW * itemsize + weight_bytes)

    out = pl.pallas_call(
        _make_se_kernel(1.0 / HW),
        out_shape=jax.ShapeDtypeStruct((B, C, HW), x_nchw.dtype),
        grid_spec=pltpu.PrefetchScalarGridSpec(
            num_scalar_prefetch=0,
            grid=(nb,),
            in_specs=[
                pl.BlockSpec((b_tile, C, HW), lambda b: (b, 0, 0), **stream_kwargs),
                pl.BlockSpec((C, Cr), lambda b: (0, 0)),   # w1^T
                pl.BlockSpec((1, Cr), lambda b: (0, 0)),   # b1
                pl.BlockSpec((Cr, C), lambda b: (0, 0)),   # w2^T
                pl.BlockSpec((1, C),  lambda b: (0, 0)),   # b2
            ],
            out_specs=pl.BlockSpec((b_tile, C, HW), lambda b: (b, 0, 0),
                                   **stream_kwargs),
        ),
        compiler_params=pltpu.CompilerParams(
            dimension_semantics=("parallel",),
            vmem_limit_bytes=vmem_limit),
        cost_estimate=cost,
        # NOTE: callers that can donate x may add input_output_aliases={0: 0}
        # to drop the separate HBM output allocation; left off here because
        # the test reuses x afterwards for the reference check.
    )(x, w1_t, b1_2d, w2_t, b2_2d)

    return out.reshape(B, C, H, W)        # free: contiguous reshape back to NCHW


def _reference(x_nchw, w1, b1, w2, b2):
    # Pure-JAX reference with identical semantics to the PyTorch module.
    y = jnp.mean(x_nchw, axis=(2, 3))                       # (B, C)
    y = jnp.maximum(y @ w1.T + b1, 0.0)                     # (B, C//r)
    y = jnp.maximum(y @ w2.T + b2, 0.0)                     # (B, C)
    return x_nchw * y[:, :, None, None]


if __name__ == "__main__":
    # Small but lane-dense shapes: HW = 16*16 = 256 (multiple of 128).
    B, C, H, W = 2, 32, 16, 16
    reduction = 8
    Cr = C // reduction

    key = jax.random.PRNGKey(0)
    kx, k1, k2, k3, k4 = jax.random.split(key, 5)

    x = jax.random.normal(kx, (B, C, H, W), dtype=jnp.float32)

    # Deterministic PyTorch-Linear-style init: U(-1/sqrt(fan_in), 1/sqrt(fan_in))
    bound1 = 1.0 / np.sqrt(C)
    w1 = jax.random.uniform(k1, (Cr, C), jnp.float32, -bound1, bound1)
    b1 = jax.random.uniform(k2, (Cr,),   jnp.float32, -bound1, bound1)
    bound2 = 1.0 / np.sqrt(Cr)
    w2 = jax.random.uniform(k3, (C, Cr), jnp.float32, -bound2, bound2)
    b2 = jax.random.uniform(k4, (C,),    jnp.float32, -bound2, bound2)

    out = speaker_encoder_layer(x, w1, b1, w2, b2)
    out = jax.block_until_ready(out)

    ref = _reference(x, w1, b1, w2, b2)
    np.testing.assert_allclose(np.asarray(out), np.asarray(ref),
                               rtol=1e-5, atol=1e-5)
    print("KERNEL_OK")
</pallas_src>

<mosaic_0001>
module attributes {stable_mosaic.version = 11 : i64} {
  func.func @_se_kernel(%arg0: i32, %arg1: memref<2x32x256xf32, #tpu.memory_space<vmem>>, %arg2: memref<32x4xf32, #tpu.memory_space<vmem>>, %arg3: memref<1x4xf32, #tpu.memory_space<vmem>>, %arg4: memref<4x32xf32, #tpu.memory_space<vmem>>, %arg5: memref<1x32xf32, #tpu.memory_space<vmem>>, %arg6: memref<2x32x256xf32, #tpu.memory_space<vmem>>) attributes {dimension_semantics = [#tpu.dimension_semantics<parallel>], iteration_bounds = array<i64: 1>, scalar_prefetch = 0 : i64, scratch_operands = 0 : i64, tpu.core_type = #tpu.core_type<tc>, window_params = [{transform_indices = @transform_0, window_bounds = array<i64: 2, 32, 256>}, {pipeline_mode = #tpu.pipeline_mode<synchronous>, transform_indices = @transform_1, window_bounds = array<i64: 32, 4>}, {pipeline_mode = #tpu.pipeline_mode<synchronous>, transform_indices = @transform_2, window_bounds = array<i64: 1, 4>}, {pipeline_mode = #tpu.pipeline_mode<synchronous>, transform_indices = @transform_3, window_bounds = array<i64: 4, 32>}, {pipeline_mode = #tpu.pipeline_mode<synchronous>, transform_indices = @transform_4, window_bounds = array<i64: 1, 32>}, {transform_indices = @transform_5, window_bounds = array<i64: 2, 32, 256>}]} {
    %c0 = arith.constant 0 : index
    %c0_0 = arith.constant 0 : index
    %c0_1 = arith.constant 0 : index
    %0 = vector.load %arg1[%c0, %c0_0, %c0_1] : memref<2x32x256xf32, #tpu.memory_space<vmem>>, vector<2x32x256xf32>
    %cst = arith.constant dense<0.000000e+00> : vector<2x32xf32>
    %1 = vector.multi_reduction <add>, %0, %cst [2] : vector<2x32x256xf32> to vector<2x32xf32>
    %cst_2 = arith.constant 3.906250e-03 : f32
    %2 = vector.broadcast %cst_2 : f32 to vector<2x32xf32>
    %3 = arith.mulf %1, %2 : vector<2x32xf32>
    %c0_3 = arith.constant 0 : index
    %c0_4 = arith.constant 0 : index
    %4 = vector.load %arg2[%c0_3, %c0_4] : memref<32x4xf32, #tpu.memory_space<vmem>>, vector<32x4xf32>
    %cst_5 = arith.constant dense<0.000000e+00> : vector<2x4xf32>
    %5 = tpu.matmul %3, %4, %cst_5 {dimension_numbers = #tpu.dot_dimension_numbers<[1], [0], [0], [1], [0, 0, 1, 1], [], []>} : vector<2x32xf32>, vector<32x4xf32>, vector<2x4xf32> -> vector<2x4xf32>
    %c0_6 = arith.constant 0 : index
    %c0_7 = arith.constant 0 : index
    %6 = vector.load %arg3[%c0_6, %c0_7] : memref<1x4xf32, #tpu.memory_space<vmem>>, vector<1x4xf32>
    %7 = vector.broadcast %6 : vector<1x4xf32> to vector<2x4xf32>
    %8 = arith.addf %5, %7 : vector<2x4xf32>
    %cst_8 = arith.constant 0.000000e+00 : f32
    %9 = vector.broadcast %cst_8 : f32 to vector<2x4xf32>
    %10 = arith.maximumf %8, %9 : vector<2x4xf32>
    %c0_9 = arith.constant 0 : index
    %c0_10 = arith.constant 0 : index
    %11 = vector.load %arg4[%c0_9, %c0_10] : memref<4x32xf32, #tpu.memory_space<vmem>>, vector<4x32xf32>
    %cst_11 = arith.constant dense<0.000000e+00> : vector<2x32xf32>
    %12 = tpu.matmul %10, %11, %cst_11 {dimension_numbers = #tpu.dot_dimension_numbers<[1], [0], [0], [1], [0, 0, 1, 1], [], []>} : vector<2x4xf32>, vector<4x32xf32>, vector<2x32xf32> -> vector<2x32xf32>
    %c0_12 = arith.constant 0 : index
    %c0_13 = arith.constant 0 : index
    %13 = vector.load %arg5[%c0_12, %c0_13] : memref<1x32xf32, #tpu.memory_space<vmem>>, vector<1x32xf32>
    %14 = vector.broadcast %13 : vector<1x32xf32> to vector<2x32xf32>
    %15 = arith.addf %12, %14 : vector<2x32xf32>
    %cst_14 = arith.constant 0.000000e+00 : f32
    %16 = vector.broadcast %cst_14 : f32 to vector<2x32xf32>
    %17 = arith.maximumf %15, %16 : vector<2x32xf32>
    %18 = vector.shape_cast %17 : vector<2x32xf32> to vector<2x32x1xf32>
    %19 = vector.broadcast %18 : vector<2x32x1xf32> to vector<2x32x256xf32>
    %20 = arith.mulf %0, %19 : vector<2x32x256xf32>
    %c0_15 = arith.constant 0 : index
    %c0_16 = arith.constant 0 : index
    %c0_17 = arith.constant 0 : index
    %21 = vector.load %arg6[%c0_15, %c0_16, %c0_17] : memref<2x32x256xf32, #tpu.memory_space<vmem>>, vector<2x32x256xf32>
    tpu.vector_store %arg6[%c0_15, %c0_16, %c0_17], %20 {strides = array<i32>} : memref<2x32x256xf32, #tpu.memory_space<vmem>>, vector<2x32x256xf32>,
    return
  }
  func.func @transform_0(%arg0: i32) -> (i32, i32, i32) {
    %c0_i32 = arith.constant 0 : i32
    %c0_i32_0 = arith.constant 0 : i32
    %c0_i32_1 = arith.constant 0 : i32
    return %arg0, %c0_i32, %c0_i32_0 : i32, i32, i32
  }
  func.func @transform_1(%arg0: i32) -> (i32, i32) {
    %c0_i32 = arith.constant 0 : i32
    %c0_i32_0 = arith.constant 0 : i32
    %c0_i32_1 = arith.constant 0 : i32
    return %c0_i32, %c0_i32_0 : i32, i32
  }
  func.func @transform_2(%arg0: i32) -> (i32, i32) {
    %c0_i32 = arith.constant 0 : i32
    %c0_i32_0 = arith.constant 0 : i32
    %c0_i32_1 = arith.constant 0 : i32
    return %c0_i32, %c0_i32_0 : i32, i32
  }
  func.func @transform_3(%arg0: i32) -> (i32, i32) {
    %c0_i32 = arith.constant 0 : i32
    %c0_i32_0 = arith.constant 0 : i32
    %c0_i32_1 = arith.constant 0 : i32
    return %c0_i32, %c0_i32_0 : i32, i32
  }
  func.func @transform_4(%arg0: i32) -> (i32, i32) {
    %c0_i32 = arith.constant 0 : i32
    %c0_i32_0 = arith.constant 0 : i32
    %c0_i32_1 = arith.constant 0 : i32
    return %c0_i32, %c0_i32_0 : i32, i32
  }
  func.func @transform_5(%arg0: i32) -> (i32, i32, i32) {
    %c0_i32 = arith.constant 0 : i32
    %c0_i32_0 = arith.constant 0 : i32
    %c0_i32_1 = arith.constant 0 : i32
    return %arg0, %c0_i32, %c0_i32_0 : i32, i32, i32
  }
}

</mosaic_0001>

<llo_original>
// kernel: tpu_custom_call.1
$region0: #{tpu_custom_call.1}
  #allocation0 [shape = 'u32[]', space=smem, size = 0x4, offset = 0x4, fixed_abs, tag = 'smem constant byte address 0x4 - core index']
  #allocation1 [shape = 'u32[144,128]{1,0:T(1,128)}', space=vmem, size = 0x12000, scoped, tag = 'internal scratch']
  %s0 = inlined_call_operand.hbm [shape: f32[2,32,256], index: 0, kind: input, shape index: {}]
  %s1 = inlined_call_operand.vmem [shape: f32[32,4], index: 1, kind: input, shape index: {}]
  %s2 = inlined_call_operand.vmem [shape: f32[1,4], index: 2, kind: input, shape index: {}]
  %s3 = inlined_call_operand.vmem [shape: f32[4,32], index: 3, kind: input, shape index: {}]
  %s4 = inlined_call_operand.vmem [shape: f32[1,32], index: 4, kind: input, shape index: {}]
  %s5 = inlined_call_operand.hbm [shape: f32[2,32,256], index: 5, kind: output, shape index: {}]
  %s6 = sld [smem:[#allocation0]]
  $region34: #{tpu_custom_call.1} parent=0
    _
  %s8 = ssub.s32 1, %s6
  %s9 = scalar_select 0, %s8, %s6
  $region1: #{tpu_custom_call.1} parent=0
    #allocation2 [shape = 'u8[65536]{0}', space=vmem, size = 0x10000, scoped, tag = 'input window, operand 0, single buffered']
    #allocation3 [shape = 's32[1]{0}', space=sflag, size = 0x4, scoped, tag = 'scoped memory for tpu_custom_call.1']
    #allocation4 [shape = 's32[1]{0}', space=sflag, size = 0x4, scoped, tag = 'scoped memory for tpu_custom_call.1']
    #allocation5 [shape = 'u8[65536]{0}', space=vmem, size = 0x10000, scoped, tag = 'output window, operand 0, single buffered']
    %10 = vsyncpa [#allocation3], 0
    %11 = vsyncpa [#allocation4], 0
    // Predicated region
    $region2: #{tpu_custom_call.1} parent=1 // pred_check
      _
    $region3: #{tpu_custom_call.1} parent=1 // pred_check_branch
      %13 = sbr.rel (0) target = $region5
    $region4: #{tpu_custom_call.1} parent=1 // pred_region
      %s15 = ssub.s32 2048, 2048
      %16 = vsyncadd [#allocation3], %s15
      %s17 = sshll.u32 [#allocation2], 4
      %s18 = int_to_ptr.vmem [resolvable:$true] %s17
      %23 = dma.hbm_to_vmem [thread:$0]  %s0, 2048, %s18, [#allocation3], 256, 256, 16
    $region5: #{tpu_custom_call.1} parent=1 // pred_fallthru
      _
    // Predicated region
    $region6: #{tpu_custom_call.1} parent=1 // pred_check
      _
    $region7: #{tpu_custom_call.1} parent=1 // pred_check_branch
      %25 = sbr.rel (0) target = $region9
    $region8: #{tpu_custom_call.1} parent=1 // pred_region
      _
    $region9: #{tpu_custom_call.1} parent=1 // pred_fallthru
      _
    // Predicated region
    $region10: #{tpu_custom_call.1} parent=1 // pred_check
      _
    $region11: #{tpu_custom_call.1} parent=1 // pred_check_branch
      %27 = sbr.rel (0) target = $region13
    $region12: #{tpu_custom_call.1} parent=1 // pred_region
      _
    $region13: #{tpu_custom_call.1} parent=1 // pred_fallthru
      _
    // Predicated region
    $region14: #{tpu_custom_call.1} parent=1 // pred_check
      _
    $region15: #{tpu_custom_call.1} parent=1 // pred_check_branch
      %29 = sbr.rel (0) target = $region17
    $region16: #{tpu_custom_call.1} parent=1 // pred_region
      _
    $region17: #{tpu_custom_call.1} parent=1 // pred_fallthru
      _
    // Predicated region
    $region18: #{tpu_custom_call.1} parent=1 // pred_check
      _
    $region19: #{tpu_custom_call.1} parent=1 // pred_check_branch
      %31 = sbr.rel (0) target = $region21
    $region20: #{tpu_custom_call.1} parent=1 // pred_region
      _
    $region21: #{tpu_custom_call.1} parent=1 // pred_fallthru
      _
    // Predicated region
    $region22: #{tpu_custom_call.1} parent=1 // pred_check
      _
    $region23: #{tpu_custom_call.1} parent=1 // pred_check_branch
      %33 = sbr.rel (0) target = $region25
    $region24: #{tpu_custom_call.1} parent=1 // pred_region
      %34 = dma.done [#allocation3], 2048
    $region25: #{tpu_custom_call.1} parent=1 // pred_fallthru
      _
    %v35 = vld [vmem:[#allocation2] sm:$0xff]
    %v36 = vld [vmem:[#allocation2 + $0x8] sm:$0xff]
    %v37 = vld [vmem:[#allocation2 + $0x10] sm:$0xff]
    %v38 = vld [vmem:[#allocation2 + $0x18] sm:$0xff]
    %v39 = vld [vmem:[#allocation2 + $0x20] sm:$0xff]
    %v40 = vld [vmem:[#allocation2 + $0x28] sm:$0xff]
    %v41 = vld [vmem:[#allocation2 + $0x30] sm:$0xff]
    %v42 = vld [vmem:[#allocation2 + $0x38] sm:$0xff]
    %v43 = vld [vmem:[#allocation2 + $0x40] sm:$0xff]
    %v44 = vld [vmem:[#allocation2 + $0x48] sm:$0xff]
    %v45 = vld [vmem:[#allocation2 + $0x50] sm:$0xff]
    %v46 = vld [vmem:[#allocation2 + $0x58] sm:$0xff]
    %v47 = vld [vmem:[#allocation2 + $0x60] sm:$0xff]
    %v48 = vld [vmem:[#allocation2 + $0x68] sm:$0xff]
    %v49 = vld [vmem:[#allocation2 + $0x70] sm:$0xff]
    %v50 = vld [vmem:[#allocation2 + $0x78] sm:$0xff]
    %v51 = vadd.f32 %v35, %v36
    %52 = vadd.xlane.f32.xlu0 %v51
    %v53 = vpop.xlane.xlu0 %52
    %v54 = vadd.f32 %v37, %v38
    %55 = vadd.xlane.f32.xlu0 %v54
    %v56 = vpop.xlane.xlu0 %55
    %v57 = vadd.f32 %v39, %v40
    %58 = vadd.xlane.f32.xlu0 %v57
    %v59 = vpop.xlane.xlu0 %58
    %v60 = vadd.f32 %v41, %v42
    %61 = vadd.xlane.f32.xlu0 %v60
    %v62 = vpop.xlane.xlu0 %61
    %v63 = vadd.f32 %v43, %v44
    %64 = vadd.xlane.f32.xlu0 %v63
    %v65 = vpop.xlane.xlu0 %64
    %v66 = vadd.f32 %v45, %v46
    %67 = vadd.xlane.f32.xlu0 %v66
    %v68 = vpop.xlane.xlu0 %67
    %v69 = vadd.f32 %v47, %v48
    %70 = vadd.xlane.f32.xlu0 %v69
    %v71 = vpop.xlane.xlu0 %70
    %v72 = vadd.f32 %v49, %v50
    %73 = vadd.xlane.f32.xlu0 %v72
    %v74 = vpop.xlane.xlu0 %73
    %v75 = vmul.f32 %v53, 0.00390625
    %v76 = vmul.f32 %v56, 0.00390625
    %v77 = vmul.f32 %v59, 0.00390625
    %v78 = vmul.f32 %v62, 0.00390625
    %v79 = vmul.f32 %v65, 0.00390625
    %v80 = vmul.f32 %v68, 0.00390625
    %v81 = vmul.f32 %v71, 0.00390625
    %v82 = vmul.f32 %v74, 0.00390625
    %v83 = vld [vmem:[%s1] sm:$0xff]
    %v84 = vld [vmem:[%s1 + $0x8] sm:$0xff]
    %v85 = vld [vmem:[%s1 + $0x10] sm:$0xff]
    %v86 = vld [vmem:[%s1 + $0x18] sm:$0xff]
    %v87 = vld [vmem:[%s2] sm:$0x1]
    %v89 = vlaneseq
    %v90 = vshrl.u32 %v89, 7
    %v91 = vsub.s32 0, %v90
    %v92 = vrot.slane %v87, %v91
    %v102 = vlaneseq
    %v103 = vand.u32 %v102, 127
    %v104 = vlaneseq
    %v105 = vshrl.u32 %v104, 7
    %v106 = vsub.s32 %v103, %v105
    %v107 = vrot.slane %v75, %v106
    %v108 = vadd.s32 %v103, 4294967288
    %v109 = vlaneseq
    %v110 = vshrl.u32 %v109, 7
    %v111 = vsub.s32 %v108, %v110
    %v112 = vrot.slane %v76, %v111
    %vm113 = vcmask 130112
    %v114 = vsel %vm113, %v112, %v107
    %v115 = vadd.s32 %v103, 4294967280
    %v116 = vlaneseq
    %v117 = vshrl.u32 %v116, 7
    %v118 = vsub.s32 %v115, %v117
    %v119 = vrot.slane %v77, %v118
    %vm120 = vcmask 195712
    %v121 = vsel %vm120, %v119, %v114
    %v122 = vadd.s32 %v103, 4294967272
    %v123 = vlaneseq
    %v124 = vshrl.u32 %v123, 7
    %v125 = vsub.s32 %v122, %v124
    %v126 = vrot.slane %v78, %v125
    %vm127 = vcmask 261312
    %v128 = vsel %vm127, %v126, %v121
    %v129 = vlaneseq
    %v130 = vshrl.u32 %v129, 7
    %v131 = vsub.s32 %v103, %v130
    %v132 = vrot.slane %v79, %v131
    %v133 = vlaneseq
    %v134 = vshrl.u32 %v133, 7
    %v135 = vsub.s32 %v108, %v134
    %v136 = vrot.slane %v80, %v135
    %v137 = vsel %vm113, %v136, %v132
    %v138 = vlaneseq
    %v139 = vshrl.u32 %v138, 7
    %v140 = vsub.s32 %v115, %v139
    %v141 = vrot.slane %v81, %v140
    %v142 = vsel %vm120, %v141, %v137
    %v143 = vlaneseq
    %v144 = vshrl.u32 %v143, 7
    %v145 = vsub.s32 %v122, %v144
    %v146 = vrot.slane %v82, %v145
    %v147 = vsel %vm127, %v146, %v142
    %vm148 = vcmask 1041409
    %v149 = vsel %vm148, %v147, %v128
    %vm150 = vcmask 261120
    %v151 = vsel %vm150, %v149, 0
    %153 = vmatprep.subr.mxu0 0.0
    %154 = vmatpush1.msra.mxu0 %v83
    %155 = vmatprep.subr.mxu0 0.0
    %156 = vmatpush1.msra.mxu0 %v84
    %157 = vmatprep.subr.mxu0 0.0
    %158 = vmatpush1.msra.mxu0 %v85
    %159 = vmatprep.subr.mxu0 0.0
    %160 = vmatpush1.msra.mxu0 %v86
    %161 = vmatprep.subr.mxu0 0.0
    %162 = vmatpush1.msra.mxu0 0.0
    %163 = vmatprep.subr.mxu0 0.0
    %164 = vmatpush1.msra.mxu0 0.0
    %165 = vmatprep.subr.mxu0 0.0
    %166 = vmatpush1.msra.mxu0 0.0
    %167 = vmatprep.subr.mxu0 0.0
    %168 = vmatpush1.msra.mxu0 0.0
    %169 = vmatprep.subr.mxu0 0.0
    %170 = vmatpush1.msra.mxu0 0.0
    %171 = vmatprep.subr.mxu0 0.0
    %172 = vmatpush1.msra.mxu0 0.0
    %173 = vmatprep.subr.mxu0 0.0
    %174 = vmatpush1.msra.mxu0 0.0
    %175 = vmatprep.subr.mxu0 0.0
    %176 = vmatpush1.msra.mxu0 0.0
    %177 = vmatprep.subr.mxu0 0.0
    %178 = vmatpush1.msra.mxu0 0.0
    %179 = vmatprep.subr.mxu0 0.0
    %180 = vmatpush1.msra.mxu0 0.0
    %181 = vmatprep.subr.mxu0 0.0
    %182 = vmatpush1.msra.mxu0 0.0
    %183 = vmatprep.subr.mxu0 0.0
    %184 = vmatpush1.msra.mxu0 0.0
    %185 = vmatprep.subr.mxu0 0.0
    %186 = vmatpush1.msra.mxu0 0.0
    %187 = vmatprep.subr.mxu0 0.0
    %188 = vmatpush1.msra.mxu0 0.0
    %189 = vmatprep.subr.mxu0 0.0
    %190 = vmatpush1.msra.mxu0 0.0
    %191 = vmatprep.subr.mxu0 0.0
    %192 = vmatpush1.msra.mxu0 0.0
    %193 = vmatprep.subr.mxu0 0.0
    %194 = vmatpush1.msra.mxu0 0.0
    %195 = vmatprep.subr.mxu0 0.0
    %196 = vmatpush1.msra.mxu0 0.0
    %197 = vmatprep.subr.mxu0 0.0
    %198 = vmatpush1.msra.mxu0 0.0
    %199 = vmatprep.subr.mxu0 0.0
    %200 = vmatpush1.msra.mxu0 0.0
    %201 = vmatprep.subr.mxu0 0.0
    %202 = vmatpush1.msra.mxu0 0.0
    %203 = vmatprep.subr.mxu0 0.0
    %204 = vmatpush1.msra.mxu0 0.0
    %205 = vmatprep.subr.mxu0 0.0
    %206 = vmatpush1.msra.mxu0 0.0
    %207 = vmatprep.subr.mxu0 0.0
    %208 = vmatpush1.msra.mxu0 0.0
    %209 = vmatprep.subr.mxu0 0.0
    %210 = vmatpush1.msra.mxu0 0.0
    %211 = vmatprep.subr.mxu0 0.0
    %212 = vmatpush1.msra.mxu0 0.0
    %213 = vmatprep.subr.mxu0 0.0
    %214 = vmatpush1.msra.mxu0 0.0
    %215 = vmatprep.subr.mxu0 0.0
    %216 = vmatpush1.msra.mxu0 0.0
    %217 = vmatprep.mubr.f32.mxu0 0.0
    %218 = vmatmul.mubr.f32.gmra.mrb[0].mxu0 %v151
    %v219 = vpop.f32.mrb[0].mxu0
    %v220 = vadd.f32 %v92, %v219
    %v221 = vpop.f32.mrb[0].mxu0
    %222 = vdwg.mxu0
    %v223 = vmax.f32 %v220, 0.0
    %v224 = vld [vmem:[%s3] sm:$0xf]
    %v225 = vld [vmem:[%s4] sm:$0x1]
    %v227 = vlaneseq
    %v228 = vshrl.u32 %v227, 7
    %v229 = vsub.s32 0, %v228
    %v230 = vrot.slane %v225, %v229
    %vm232 = vcmask 31744
    %v234 = vsel %vm232, %v223, 0
    %vm236 = vcmask 1043456
    %v238 = vsel %vm236, %v224, 0
    %240 = vmatprep.subr.mxu0 0.0
    %241 = vmatpush1.msra.mxu0 %v238
    %242 = vmatprep.subr.mxu0 0.0
    %243 = vmatpush1.msra.mxu0 0.0
    %244 = vmatprep.subr.mxu0 0.0
    %245 = vmatpush1.msra.mxu0 0.0
    %246 = vmatprep.subr.mxu0 0.0
    %247 = vmatpush1.msra.mxu0 0.0
    %248 = vmatprep.subr.mxu0 0.0
    %249 = vmatpush1.msra.mxu0 0.0
    %250 = vmatprep.subr.mxu0 0.0
    %251 = vmatpush1.msra.mxu0 0.0
    %252 = vmatprep.subr.mxu0 0.0
    %253 = vmatpush1.msra.mxu0 0.0
    %254 = vmatprep.subr.mxu0 0.0
    %255 = vmatpush1.msra.mxu0 0.0
    %256 = vmatprep.subr.mxu0 0.0
    %257 = vmatpush1.msra.mxu0 0.0
    %258 = vmatprep.subr.mxu0 0.0
    %259 = vmatpush1.msra.mxu0 0.0
    %260 = vmatprep.subr.mxu0 0.0
    %261 = vmatpush1.msra.mxu0 0.0
    %262 = vmatprep.subr.mxu0 0.0
    %263 = vmatpush1.msra.mxu0 0.0
    %264 = vmatprep.subr.mxu0 0.0
    %265 = vmatpush1.msra.mxu0 0.0
    %266 = vmatprep.subr.mxu0 0.0
    %267 = vmatpush1.msra.mxu0 0.0
    %268 = vmatprep.subr.mxu0 0.0
    %269 = vmatpush1.msra.mxu0 0.0
    %270 = vmatprep.subr.mxu0 0.0
    %271 = vmatpush1.msra.mxu0 0.0
    %272 = vmatprep.subr.mxu0 0.0
    %273 = vmatpush1.msra.mxu0 0.0
    %274 = vmatprep.subr.mxu0 0.0
    %275 = vmatpush1.msra.mxu0 0.0
    %276 = vmatprep.subr.mxu0 0.0
    %277 = vmatpush1.msra.mxu0 0.0
    %278 = vmatprep.subr.mxu0 0.0
    %279 = vmatpush1.msra.mxu0 0.0
    %280 = vmatprep.subr.mxu0 0.0
    %281 = vmatpush1.msra.mxu0 0.0
    %282 = vmatprep.subr.mxu0 0.0
    %283 = vmatpush1.msra.mxu0 0.0
    %284 = vmatprep.subr.mxu0 0.0
    %285 = vmatpush1.msra.mxu0 0.0
    %286 = vmatprep.subr.mxu0 0.0
    %287 = vmatpush1.msra.mxu0 0.0
    %288 = vmatprep.subr.mxu0 0.0
    %289 = vmatpush1.msra.mxu0 0.0
    %290 = vmatprep.subr.mxu0 0.0
    %291 = vmatpush1.msra.mxu0 0.0
    %292 = vmatprep.subr.mxu0 0.0
    %293 = vmatpush1.msra.mxu0 0.0
    %294 = vmatprep.subr.mxu0 0.0
    %295 = vmatpush1.msra.mxu0 0.0
    %296 = vmatprep.subr.mxu0 0.0
    %297 = vmatpush1.msra.mxu0 0.0
    %298 = vmatprep.subr.mxu0 0.0
    %299 = vmatpush1.msra.mxu0 0.0
    %300 = vmatprep.subr.mxu0 0.0
    %301 = vmatpush1.msra.mxu0 0.0
    %302 = vmatprep.subr.mxu0 0.0
    %303 = vmatpush1.msra.mxu0 0.0
    %304 = vmatprep.mubr.f32.mxu0 0.0
    %305 = vmatmul.mubr.f32.gmra.mrb[0].mxu0 %v234
    %v306 = vpop.f32.mrb[0].mxu0
    %v307 = vadd.f32 %v230, %v306
    %v308 = vpop.f32.mrb[0].mxu0
    %309 = vdwg.mxu0
    %v310 = vmax.f32 %v307, 0.0
    %v311 = vlaneseq
    %v312 = vshrl.u32 %v311, 7
    %v313 = vsub.s32 0, %v312
    %v314 = vrot.slane %v310, %v313
    %316 = vbcast.lane.b32.xlu0 %v314, 256
    %v317 = vpop.permute.xlu0 %316
    %s319 = sor.u32 256, 8
    %320 = vbcast.lane.b32.xlu0 %v314, %s319
    %v321 = vpop.permute.xlu0 %320
    %s323 = sor.u32 256, 16
    %324 = vbcast.lane.b32.xlu0 %v314, %s323
    %v325 = vpop.permute.xlu0 %324
    %s327 = sor.u32 256, 24
    %328 = vbcast.lane.b32.xlu0 %v314, %s327
    %v329 = vpop.permute.xlu0 %328
    %v330 = vlaneseq
    %v331 = vshrl.u32 %v330, 7
    %v332 = vsub.s32 1, %v331
    %v333 = vrot.slane %v310, %v332
    %335 = vbcast.lane.b32.xlu0 %v333, 256
    %v336 = vpop.permute.xlu0 %335
    %s338 = sor.u32 256, 8
    %339 = vbcast.lane.b32.xlu0 %v333, %s338
    %v340 = vpop.permute.xlu0 %339
    %s342 = sor.u32 256, 16
    %343 = vbcast.lane.b32.xlu0 %v333, %s342
    %v344 = vpop.permute.xlu0 %343
    %s346 = sor.u32 256, 24
    %347 = vbcast.lane.b32.xlu0 %v333, %s346
    %v348 = vpop.permute.xlu0 %347
    %v349 = vmul.f32 %v35, %v317
    %v350 = vmul.f32 %v36, %v317
    %v351 = vmul.f32 %v37, %v321
    %v352 = vmul.f32 %v38, %v321
    %v353 = vmul.f32 %v39, %v325
    %v354 = vmul.f32 %v40, %v325
    %v355 = vmul.f32 %v41, %v329
    %v356 = vmul.f32 %v42, %v329
    %v357 = vmul.f32 %v43, %v336
    %v358 = vmul.f32 %v44, %v336
    %v359 = vmul.f32 %v45, %v340
    %v360 = vmul.f32 %v46, %v340
    %v361 = vmul.f32 %v47, %v344
    %v362 = vmul.f32 %v48, %v344
    %v363 = vmul.f32 %v49, %v348
    %v364 = vmul.f32 %v50, %v348
    %365 = vst [vmem:[#allocation5] sm:$0xff] %v349
    %366 = vst [vmem:[#allocation5 + $0x8] sm:$0xff] %v350
    %367 = vst [vmem:[#allocation5 + $0x10] sm:$0xff] %v351
    %368 = vst [vmem:[#allocation5 + $0x18] sm:$0xff] %v352
    %369 = vst [vmem:[#allocation5 + $0x20] sm:$0xff] %v353
    %370 = vst [vmem:[#allocation5 + $0x28] sm:$0xff] %v354
    %371 = vst [vmem:[#allocation5 + $0x30] sm:$0xff] %v355
    %372 = vst [vmem:[#allocation5 + $0x38] sm:$0xff] %v356
    %373 = vst [vmem:[#allocation5 + $0x40] sm:$0xff] %v357
    %374 = vst [vmem:[#allocation5 + $0x48] sm:$0xff] %v358
    %375 = vst [vmem:[#allocation5 + $0x50] sm:$0xff] %v359
    %376 = vst [vmem:[#allocation5 + $0x58] sm:$0xff] %v360
    %377 = vst [vmem:[#allocation5 + $0x60] sm:$0xff] %v361
    %378 = vst [vmem:[#allocation5 + $0x68] sm:$0xff] %v362
    %379 = vst [vmem:[#allocation5 + $0x70] sm:$0xff] %v363
    %380 = vst [vmem:[#allocation5 + $0x78] sm:$0xff] %v364
    // Predicated region
    $region26: #{tpu_custom_call.1} parent=1 // pred_check
      _
    $region27: #{tpu_custom_call.1} parent=1 // pred_check_branch
      %382 = sbr.rel (0) target = $region29
    $region28: #{tpu_custom_call.1} parent=1 // pred_region
      %s384 = ssub.s32 2048, 2048
      %385 = vsyncadd [#allocation4], %s384
      %s386 = sshll.u32 [#allocation5], 4
      %s387 = int_to_ptr.vmem [resolvable:$true] %s386
      %392 = dma.vmem_to_hbm [thread:$0]  %s387, 2048, %s5, [#allocation4], 256, 256, 16
    $region29: #{tpu_custom_call.1} parent=1 // pred_fallthru
      _
    // Predicated region
    $region30: #{tpu_custom_call.1} parent=1 // pred_check
      _
    $region31: #{tpu_custom_call.1} parent=1 // pred_check_branch
      %394 = sbr.rel (0) target = $region33
    $region32: #{tpu_custom_call.1} parent=1 // pred_region
      %395 = dma.done [#allocation4], 2048
    $region33: #{tpu_custom_call.1} parent=1 // pred_fallthru
      _
    %396 = vsyncpa [#allocation3], 1
    %397 = vsyncpa [#allocation4], 1

</llo_original>
